<compile_context>
chip_gen: v7x
topology: tpu7x:2x2x1
jax: 0.10.0
libtpu: 0.0.40
codegen_flags: <defaults>
</compile_context>

<pallas_src>
import jax
import jax.numpy as jnp
from jax.experimental import pallas as pl
from jax.experimental.pallas import tpu as pltpu

LANE = 128


def _ceil_to(x, m):
    return (x + m - 1) // m * m


def _silu(x):
    return x * jax.nn.sigmoid(x)


# ---------------------------------------------------------------------------
# Kernels
# ---------------------------------------------------------------------------

def _temb_kernel(t_ref, w_ref, b_ref, o_ref):
    """(B, Cout) <- silu(t_emb) @ W_emb + (b_emb + b_conv_in)."""
    t = _silu(t_ref[...].astype(jnp.float32))
    acc = jnp.dot(t.astype(jnp.bfloat16), w_ref[...],
                  preferred_element_type=jnp.float32)
    o_ref[...] = acc + b_ref[...]


def _im2col_patch(slab_f32, tr, w):
    """(B, tr+2, W+2, C) f32 slab -> (B*tr*W, 9*C) bf16 im2col patch (in VMEM)."""
    b = slab_f32.shape[0]
    c = slab_f32.shape[-1]
    slab = slab_f32.astype(jnp.bfloat16)
    cols = [slab[:, ky:ky + tr, kx:kx + w, :]
            for ky in range(3) for kx in range(3)]          # tap k = ky*3 + kx
    patch = jnp.concatenate(cols, axis=-1)                  # (B, tr, W, 9*C)
    return patch.reshape(b * tr * w, 9 * c)


def _in_conv_kernel(x_slab_ref, w_ref, bt_ref, h_ref):
    """h = conv3x3(silu(x)) + (b_in + silu(t_emb) @ W_emb + b_emb)."""
    B, TR, W, Co = h_ref.shape
    xs = _silu(x_slab_ref[0].astype(jnp.float32))           # SiLU once per element
    patch = _im2col_patch(xs, TR, W)                        # (B*TR*W, 9*Cin)
    acc = jnp.dot(patch, w_ref[...], preferred_element_type=jnp.float32)
    acc = acc.reshape(B, TR, W, Co) + bt_ref[...][:, None, None, :]
    h_ref[...] = acc.astype(h_ref.dtype)


def _out_conv_kernel_skip(h_slab_ref, x_slab_ref, w_ref, ws_ref, b_ref, o_ref):
    """out = conv3x3(silu(h)) + (x @ W_skip) + (b_out + b_skip)."""
    B, TR, W, Co = o_ref.shape
    hs = _silu(h_slab_ref[0].astype(jnp.float32))
    patch = _im2col_patch(hs, TR, W)
    acc = jnp.dot(patch, w_ref[...], preferred_element_type=jnp.float32)
    x_in = x_slab_ref[0][:, 1:1 + TR, 1:1 + W, :]           # interior (drop halo)
    xin = x_in.astype(jnp.bfloat16).reshape(B * TR * W, x_in.shape[-1])
    acc = acc + jnp.dot(xin, ws_ref[...], preferred_element_type=jnp.float32)
    acc = acc.reshape(B, TR, W, Co) + b_ref[...].reshape(1, 1, 1, Co)
    o_ref[...] = acc.astype(o_ref.dtype)


def _out_conv_kernel_ident(h_slab_ref, x_slab_ref, w_ref, b_ref, o_ref):
    """out = conv3x3(silu(h)) + b_out + x   (identity skip, residual kept in f32)."""
    B, TR, W, Co = o_ref.shape
    hs = _silu(h_slab_ref[0].astype(jnp.float32))
    patch = _im2col_patch(hs, TR, W)
    acc = jnp.dot(patch, w_ref[...], preferred_element_type=jnp.float32)
    x_in = x_slab_ref[0][:, 1:1 + TR, 1:1 + W, :].astype(jnp.float32)
    acc = acc.reshape(B, TR, W, Co) + x_in + b_ref[...].reshape(1, 1, 1, Co)
    o_ref[...] = acc.astype(o_ref.dtype)


# ---------------------------------------------------------------------------
# Plain-JAX glue
# ---------------------------------------------------------------------------

def _row_slabs(x_nhwc, tr):
    """(B, H, W, C) -> (H//tr, B, tr+2, W+2, C) overlapping row slabs, zero 1-px halo."""
    B, H, W, C = x_nhwc.shape
    xp = jnp.pad(x_nhwc, ((0, 0), (1, 1), (1, 1), (0, 0)))
    n_t = H // tr
    return jnp.stack([xp[:, i * tr: i * tr + tr + 2] for i in range(n_t)], axis=0)


def _choose_row_tile(B, W, c_in_p, c_out_p, H, budget_bytes=16 << 20):
    """Largest divisor of H whose working set fits the VMEM budget (prefer >=2 steps)."""
    fixed = (9 * c_in_p * c_out_p + 9 * c_out_p * c_out_p + c_in_p * c_out_p) * 2
    per_row = (2 * B * (W + 2) * c_in_p * 4          # x slab (f32), double-buffered
               + 2 * B * (W + 2) * c_out_p * 2       # h slab (bf16), double-buffered
               + B * W * 9 * max(c_in_p, c_out_p) * 2  # im2col patch (bf16)
               + 2 * B * W * c_out_p * 4)            # f32 accumulator / output tile
    divs = [d for d in range(H, 0, -1) if H % d == 0]
    fits = [d for d in divs if fixed + (d + 2) * per_row <= budget_bytes]
    if not fits:
        return 1
    tr = fits[0]
    if tr == H:                                      # prefer >=2 grid steps (pipeline / megacore)
        smaller = [d for d in fits if d < H and d >= 4]
        if smaller:
            tr = smaller[0]
    return tr


_VMEM = pl.BlockSpec(memory_space=pltpu.MemorySpace.VMEM)


class ResBlockPallas:
    """Deterministic, synthetic-weight Pallas implementation of ResBlock forward."""

    def __init__(self, channels, d_t_emb, out_channels, key):
        if out_channels is None:
            out_channels = channels
        self.channels = channels
        self.out_channels = out_channels
        self.d_t_emb = d_t_emb
        ks = jax.random.split(key, 8)

        def u(k, shape, fan_in):
            bound = 1.0 / (fan_in ** 0.5)
            return jax.random.uniform(k, shape, jnp.float32, -bound, bound)

        C, Co = channels, out_channels
        # Raw parameters. Conv weights stored tap-major (9, Cin, Cout), tap k = ky*3+kx
        # (i.e. HWIO reshaped), identical to the reference conv.
        self.w_in = u(ks[0], (9, C, Co), C * 9)
        self.b_in = u(ks[1], (Co,), C * 9)
        self.w_emb = u(ks[2], (d_t_emb, Co), d_t_emb)
        self.b_emb = u(ks[3], (Co,), d_t_emb)
        self.w_out = u(ks[4], (9, Co, Co), Co * 9)
        self.b_out = u(ks[5], (Co,), Co * 9)
        if C != Co:
            self.w_skip = u(ks[6], (C, Co), C)
            self.b_skip = u(ks[7], (Co,), C)
        else:
            self.w_skip = None
            self.b_skip = None

        # Lane-dense (multiple-of-128 channel) packed parameters for the kernels.
        self.c_in_p = _ceil_to(C, LANE)
        self.c_out_p = _ceil_to(Co, LANE)
        Cp, Cop = self.c_in_p, self.c_out_p

        def pad_oc(v):  # (Co,) -> (1, Cop) f32
            return jnp.pad(v, (0, Cop - Co)).reshape(1, Cop).astype(jnp.float32)

        self.w_in_p = jnp.pad(self.w_in, ((0, 0), (0, Cp - C), (0, Cop - Co))
                              ).reshape(9 * Cp, Cop).astype(jnp.bfloat16)
        self.w_out_p = jnp.pad(self.w_out, ((0, 0), (0, Cop - Co), (0, Cop - Co))
                               ).reshape(9 * Cop, Cop).astype(jnp.bfloat16)
        self.w_emb_p = jnp.pad(self.w_emb, ((0, 0), (0, Cop - Co))).astype(jnp.bfloat16)
        self.b_in_emb_p = pad_oc(self.b_in + self.b_emb)      # conv-in bias folded into t-emb proj
        if self.w_skip is not None:
            self.w_skip_p = jnp.pad(self.w_skip, ((0, Cp - C), (0, Cop - Co))
                                    ).astype(jnp.bfloat16)
            self.b_out_p = pad_oc(self.b_out + self.b_skip)   # skip bias folded into out bias
        else:
            self.w_skip_p = None
            self.b_out_p = pad_oc(self.b_out)

    def __call__(self, x_nchw, t_emb):
        B, C, H, W = x_nchw.shape
        Co, Cp, Cop = self.out_channels, self.c_in_p, self.c_out_p

        # TODO(synk): keep activations NHWC end-to-end across the UNet instead of
        # transposing at every block boundary.
        x = jnp.transpose(x_nchw, (0, 2, 3, 1)).astype(jnp.float32)     # NHWC
        x = jnp.pad(x, ((0, 0), (0, 0), (0, 0), (0, Cp - C)))

        tr = _choose_row_tile(B, W, Cp, Cop, H)
        n_t = H // tr
        grid = (n_t,)
        cparams = pltpu.CompilerParams(
            dimension_semantics=("parallel",),     # row tiles shard across v7x's 2 TCs
            vmem_limit_bytes=64 * 1024 * 1024,
        )

        # TODO(synk): read halo'd slabs straight from the padded array (pl.Element /
        # manual DMA) to remove the small (tr+2)/tr slab re-materialization pass.
        x_slabs = _row_slabs(x, tr)                # (n_t, B, tr+2, W+2, Cp) f32

        # Time-embedding projection + conv-in bias (tiny, hoisted out of the conv grid).
        bt = pl.pallas_call(
            _temb_kernel,
            out_shape=jax.ShapeDtypeStruct((B, Cop), jnp.float32),
            in_specs=[_VMEM, _VMEM, _VMEM],
            out_specs=_VMEM,
        )(t_emb.astype(jnp.float32), self.w_emb_p, self.b_in_emb_p)

        # h = conv3x3(silu(x)) + b_in + temb_proj
        h = pl.pallas_call(
            _in_conv_kernel,
            out_shape=jax.ShapeDtypeStruct((B, H, W, Cop), jnp.bfloat16),
            grid=grid,
            in_specs=[
                pl.BlockSpec((1, B, tr + 2, W + 2, Cp), lambda i: (i, 0, 0, 0, 0)),
                pl.BlockSpec((9 * Cp, Cop), lambda i: (0, 0)),
                pl.BlockSpec((B, Cop), lambda i: (0, 0)),
            ],
            out_specs=pl.BlockSpec((B, tr, W, Cop), lambda i: (0, i, 0, 0)),
            compiler_params=cparams,
        )(x_slabs, self.w_in_p, bt)

        h_slabs = _row_slabs(h, tr)                # (n_t, B, tr+2, W+2, Cop) bf16

        if self.w_skip_p is not None:
            out = pl.pallas_call(
                _out_conv_kernel_skip,
                out_shape=jax.ShapeDtypeStruct((B, H, W, Cop), jnp.float32),
                grid=grid,
                in_specs=[
                    pl.BlockSpec((1, B, tr + 2, W + 2, Cop), lambda i: (i, 0, 0, 0, 0)),
                    pl.BlockSpec((1, B, tr + 2, W + 2, Cp), lambda i: (i, 0, 0, 0, 0)),
                    pl.BlockSpec((9 * Cop, Cop), lambda i: (0, 0)),
                    pl.BlockSpec((Cp, Cop), lambda i: (0, 0)),
                    pl.BlockSpec((1, Cop), lambda i: (0, 0)),
                ],
                out_specs=pl.BlockSpec((B, tr, W, Cop), lambda i: (0, i, 0, 0)),
                compiler_params=cparams,
            )(h_slabs, x_slabs, self.w_out_p, self.w_skip_p, self.b_out_p)
        else:
            out = pl.pallas_call(
                _out_conv_kernel_ident,
                out_shape=jax.ShapeDtypeStruct((B, H, W, Cop), jnp.float32),
                grid=grid,
                in_specs=[
                    pl.BlockSpec((1, B, tr + 2, W + 2, Cop), lambda i: (i, 0, 0, 0, 0)),
                    pl.BlockSpec((1, B, tr + 2, W + 2, Cp), lambda i: (i, 0, 0, 0, 0)),
                    pl.BlockSpec((9 * Cop, Cop), lambda i: (0, 0)),
                    pl.BlockSpec((1, Cop), lambda i: (0, 0)),
                ],
                out_specs=pl.BlockSpec((B, tr, W, Cop), lambda i: (0, i, 0, 0)),
                compiler_params=cparams,
            )(h_slabs, x_slabs, self.w_out_p, self.b_out_p)

        out = out[..., :Co]                        # drop channel padding
        return jnp.transpose(out, (0, 3, 1, 2))    # back to NCHW


def resblock_reference(m, x_nchw, t_emb):
    """Pure-JAX f32 reference (lax.conv, HIGHEST precision) with identical semantics."""
    x = jnp.transpose(x_nchw, (0, 2, 3, 1)).astype(jnp.float32)
    Co = m.out_channels

    def conv3x3(inp, w9, b):
        w = w9.reshape(3, 3, inp.shape[-1], Co)    # HWIO
        y = jax.lax.conv_general_dilated(
            inp, w, (1, 1), "SAME",
            dimension_numbers=("NHWC", "HWIO", "NHWC"),
            precision=jax.lax.Precision.HIGHEST)
        return y + b.reshape(1, 1, 1, Co)

    h = conv3x3(_silu(x), m.w_in, m.b_in)
    t = jnp.dot(_silu(t_emb), m.w_emb, precision=jax.lax.Precision.HIGHEST) + m.b_emb
    h = h + t[:, None, None, :]
    h = conv3x3(_silu(h), m.w_out, m.b_out)
    if m.w_skip is not None:
        skip = jnp.einsum("bhwc,co->bhwo", x, m.w_skip,
                          precision=jax.lax.Precision.HIGHEST)
        skip = skip + m.b_skip.reshape(1, 1, 1, Co)
    else:
        skip = x
    return jnp.transpose(skip + h, (0, 3, 1, 2))


if __name__ == "__main__":
    key = jax.random.PRNGKey(0)
    k_x, k_t, k_p1, k_p2 = jax.random.split(key, 4)

    B, C, H, W = 2, 4, 16, 16
    d_t_emb = 32
    x = jax.random.normal(k_x, (B, C, H, W), jnp.float32)
    t_emb = jax.random.normal(k_t, (B, d_t_emb), jnp.float32)

    # Case 1: channels != out_channels -> 1x1-conv skip connection.
    block = ResBlockPallas(C, d_t_emb, 8, k_p1)
    out = jax.block_until_ready(block(x, t_emb))
    ref = resblock_reference(block, x, t_emb)
    assert out.shape == (B, 8, H, W), out.shape
    err = float(jnp.max(jnp.abs(out - ref)))
    assert jnp.allclose(out, ref, rtol=2e-2, atol=2e-2), f"max_abs_err={err}"

    # Case 2: out_channels is None -> identity skip connection.
    block2 = ResBlockPallas(C, d_t_emb, None, k_p2)
    out2 = jax.block_until_ready(block2(x, t_emb))
    ref2 = resblock_reference(block2, x, t_emb)
    assert out2.shape == (B, C, H, W), out2.shape
    err2 = float(jnp.max(jnp.abs(out2 - ref2)))
    assert jnp.allclose(out2, ref2, rtol=2e-2, atol=2e-2), f"max_abs_err={err2}"

    print("KERNEL_OK")
</pallas_src>

<mosaic_0001>
module attributes {stable_mosaic.version = 11 : i64} {
  func.func @_temb_kernel(%arg0: memref<2x32xf32, #tpu.memory_space<vmem>>, %arg1: memref<32x128xbf16, #tpu.memory_space<vmem>>, %arg2: memref<1x128xf32, #tpu.memory_space<vmem>>, %arg3: memref<2x128xf32, #tpu.memory_space<vmem>>) attributes {dimension_semantics = [], scalar_prefetch = 0 : i64, scratch_operands = 0 : i64, tpu.core_type = #tpu.core_type<tc>} {
    %c0 = arith.constant 0 : index
    %c0_0 = arith.constant 0 : index
    %0 = vector.load %arg0[%c0, %c0_0] : memref<2x32xf32, #tpu.memory_space<vmem>>, vector<2x32xf32>
    %1 = arith.negf %0 : vector<2x32xf32>
    %2 = math.exp %1 : vector<2x32xf32>
    %cst = arith.constant 1.000000e+00 : f32
    %3 = vector.broadcast %cst : f32 to vector<2x32xf32>
    %4 = arith.addf %3, %2 : vector<2x32xf32>
    %5 = arith.divf %3, %4 : vector<2x32xf32>
    %6 = arith.mulf %0, %5 : vector<2x32xf32>
    %7 = arith.truncf %6 : vector<2x32xf32> to vector<2x32xbf16>
    %c0_1 = arith.constant 0 : index
    %c0_2 = arith.constant 0 : index
    %8 = vector.load %arg1[%c0_1, %c0_2] : memref<32x128xbf16, #tpu.memory_space<vmem>>, vector<32x128xbf16>
    %cst_3 = arith.constant dense<0.000000e+00> : vector<2x128xf32>
    %9 = tpu.matmul %7, %8, %cst_3 {dimension_numbers = #tpu.dot_dimension_numbers<[1], [0], [0], [1], [0, 0, 1, 1], [], []>} : vector<2x32xbf16>, vector<32x128xbf16>, vector<2x128xf32> -> vector<2x128xf32>
    %c0_4 = arith.constant 0 : index
    %c0_5 = arith.constant 0 : index
    %10 = vector.load %arg2[%c0_4, %c0_5] : memref<1x128xf32, #tpu.memory_space<vmem>>, vector<1x128xf32>
    %11 = vector.broadcast %10 : vector<1x128xf32> to vector<2x128xf32>
    %12 = arith.addf %9, %11 : vector<2x128xf32>
    %c0_6 = arith.constant 0 : index
    %c0_7 = arith.constant 0 : index
    %13 = vector.load %arg3[%c0_6, %c0_7] : memref<2x128xf32, #tpu.memory_space<vmem>>, vector<2x128xf32>
    tpu.vector_store %arg3[%c0_6, %c0_7], %12 {strides = array<i32>} : memref<2x128xf32, #tpu.memory_space<vmem>>, vector<2x128xf32>,
    return
  }
}

</mosaic_0001>

<llo_original>
// kernel: tpu_custom_call.1
$region0: #{tpu_custom_call.1}
  #allocation0 [shape = 'u32[]', space=smem, size = 0x4, offset = 0x4, fixed_abs, tag = 'smem constant byte address 0x4 - core index']
  #allocation1 [shape = 'u32[144,128]{1,0:T(1,128)}', space=vmem, size = 0x12000, scoped, tag = 'internal scratch']
  %s0 = inlined_call_operand.hbm [shape: f32[2,32], index: 0, kind: input, shape index: {}]
  %s1 = inlined_call_operand.hbm [shape: bf16[32,128], index: 1, kind: input, shape index: {}]
  %s2 = inlined_call_operand.vmem [shape: f32[1,128], index: 2, kind: input, shape index: {}]
  %s3 = inlined_call_operand.hbm [shape: f32[2,128], index: 3, kind: output, shape index: {}]
  %s4 = sld [smem:[#allocation0]]
  $region30: #{tpu_custom_call.1} parent=0
    _
  %s6 = ssub.s32 1, %s4
  %s7 = scalar_select 0, %s6, %s4
  $region1: #{tpu_custom_call.1} parent=0
    #allocation2 [shape = 'u8[1024]{0}', space=vmem, size = 0x400, scoped, tag = 'input window, operand 0, single buffered']
    #allocation3 [shape = 's32[1]{0}', space=sflag, size = 0x4, scoped, tag = 'scoped memory for tpu_custom_call.1']
    #allocation4 [shape = 's32[1]{0}', space=sflag, size = 0x4, scoped, tag = 'scoped memory for tpu_custom_call.1']
    #allocation5 [shape = 'u8[8192]{0}', space=vmem, size = 0x2000, scoped, tag = 'input window, operand 1, single buffered']
    #allocation6 [shape = 's32[1]{0}', space=sflag, size = 0x4, scoped, tag = 'scoped memory for tpu_custom_call.1']
    #allocation7 [shape = 'u8[1024]{0}', space=vmem, size = 0x400, scoped, tag = 'output window, operand 0, single buffered']
    %8 = vsyncpa [#allocation3], 0
    %9 = vsyncpa [#allocation6], 0
    %10 = vsyncpa [#allocation4], 0
    // Predicated region
    $region2: #{tpu_custom_call.1} parent=1 // pred_check
      _
    $region3: #{tpu_custom_call.1} parent=1 // pred_check_branch
      %12 = sbr.rel (0) target = $region5
    $region4: #{tpu_custom_call.1} parent=1 // pred_region
      %s14 = ssub.s32 32, 32
      %15 = vsyncadd [#allocation3], %s14
      %s17 = sshll.u32 [#allocation2], 4
      %s18 = int_to_ptr.vmem [resolvable:$true] %s17
      %20 = dma.hbm_to_vmem [thread:$0]  %s0, 32, %s18, [#allocation3]
    $region5: #{tpu_custom_call.1} parent=1 // pred_fallthru
      _
    // Predicated region
    $region6: #{tpu_custom_call.1} parent=1 // pred_check
      _
    $region7: #{tpu_custom_call.1} parent=1 // pred_check_branch
      %22 = sbr.rel (0) target = $region9
    $region8: #{tpu_custom_call.1} parent=1 // pred_region
      %s24 = ssub.s32 256, 256
      %25 = vsyncadd [#allocation6], %s24
      %s26 = sshll.u32 [#allocation5], 4
      %s27 = int_to_ptr.vmem [resolvable:$true] %s26
      %32 = dma.hbm_to_vmem [thread:$0]  %s1, 256, %s27, [#allocation6], 64, 64, 4
    $region9: #{tpu_custom_call.1} parent=1 // pred_fallthru
      _
    // Predicated region
    $region10: #{tpu_custom_call.1} parent=1 // pred_check
      _
    $region11: #{tpu_custom_call.1} parent=1 // pred_check_branch
      %34 = sbr.rel (0) target = $region13
    $region12: #{tpu_custom_call.1} parent=1 // pred_region
      _
    $region13: #{tpu_custom_call.1} parent=1 // pred_fallthru
      _
    // Predicated region
    $region14: #{tpu_custom_call.1} parent=1 // pred_check
      _
    $region15: #{tpu_custom_call.1} parent=1 // pred_check_branch
      %36 = sbr.rel (0) target = $region17
    $region16: #{tpu_custom_call.1} parent=1 // pred_region
      %37 = dma.done [#allocation3], 32
    $region17: #{tpu_custom_call.1} parent=1 // pred_fallthru
      _
    // Predicated region
    $region18: #{tpu_custom_call.1} parent=1 // pred_check
      _
    $region19: #{tpu_custom_call.1} parent=1 // pred_check_branch
      %39 = sbr.rel (0) target = $region21
    $region20: #{tpu_custom_call.1} parent=1 // pred_region
      %40 = dma.done [#allocation6], 256
    $region21: #{tpu_custom_call.1} parent=1 // pred_fallthru
      _
    %v42 = vld [vmem:[#allocation2] sm:$0x3]
    %v43 = vxor.u32 %v42, 2147483648
    %v44 = vmul.f32 %v43, 1.442695
    %v45 = vpow.pop %v44
    %v46 = vadd.f32 %v45, 1.0
    %v47 = vrcp.pop %v46
    %v48 = vmul.f32 1.0, %v47
    %v49 = vmul.f32 %v42, %v48
    %v50 = vpack.c.bf16 %v49, %v49
    %v51 = vld [vmem:[#allocation5] sm:$0xf]
    %v52 = vld [vmem:[#allocation5 + $0x4] sm:$0xf]
    %v53 = vld [vmem:[#allocation5 + $0x8] sm:$0xf]
    %v54 = vld [vmem:[#allocation5 + $0xc] sm:$0xf]
    %v55 = vld [vmem:[%s2] sm:$0x1]
    %v57 = vlaneseq
    %v58 = vshrl.u32 %v57, 7
    %v59 = vsub.s32 0, %v58
    %v60 = vrot.slane %v55, %v59
    %v66 = vunpack.c.l.b16 %v51
    %v67 = vunpack.c.l.b16 %v52
    %v68 = vunpack.c.l.b16 %v53
    %v69 = vunpack.c.l.b16 %v54
    %v70 = vpack.c.b16 %v67, %v66
    %v71 = vpack.c.b16 %v69, %v68
    %vm74 = vcmask 261120
    %v76 = vsel %vm74, %v50, 0
    %78 = vmatprep.subr.bf16.mxu0 0
    %79 = vmatpush1.bf16.msra.mxu0 %v70
    %80 = vmatprep.subr.bf16.mxu0 0
    %81 = vmatpush1.bf16.msra.mxu0 %v71
    %82 = vmatprep.subr.bf16.mxu0 0
    %83 = vmatpush1.bf16.msra.mxu0 0
    %84 = vmatprep.subr.bf16.mxu0 0
    %85 = vmatpush1.bf16.msra.mxu0 0
    %86 = vmatprep.subr.bf16.mxu0 0
    %87 = vmatpush1.bf16.msra.mxu0 0
    %88 = vmatprep.subr.bf16.mxu0 0
    %89 = vmatpush1.bf16.msra.mxu0 0
    %90 = vmatprep.subr.bf16.mxu0 0
    %91 = vmatpush1.bf16.msra.mxu0 0
    %92 = vmatprep.subr.bf16.mxu0 0
    %93 = vmatpush1.bf16.msra.mxu0 0
    %94 = vmatprep.subr.bf16.mxu0 0
    %95 = vmatpush1.bf16.msra.mxu0 0
    %96 = vmatprep.subr.bf16.mxu0 0
    %97 = vmatpush1.bf16.msra.mxu0 0
    %98 = vmatprep.subr.bf16.mxu0 0
    %99 = vmatpush1.bf16.msra.mxu0 0
    %100 = vmatprep.subr.bf16.mxu0 0
    %101 = vmatpush1.bf16.msra.mxu0 0
    %102 = vmatprep.subr.bf16.mxu0 0
    %103 = vmatpush1.bf16.msra.mxu0 0
    %104 = vmatprep.subr.bf16.mxu0 0
    %105 = vmatpush1.bf16.msra.mxu0 0
    %106 = vmatprep.subr.bf16.mxu0 0
    %107 = vmatpush1.bf16.msra.mxu0 0
    %108 = vmatprep.subr.bf16.mxu0 0
    %109 = vmatpush1.bf16.msra.mxu0 0
    %110 = vmatprep.mubr.bf16.mxu0 0
    %111 = vmatmul.mubr.bf16.gmra.mrb[0].mxu0 %v76
    %v112 = vpop.f32.mrb[0].mxu0
    %v113 = vadd.f32 %v60, %v112
    %v114 = vpop.f32.mrb[0].mxu0
    %v115 = vpop.f32.mrb[0].mxu0
    %v116 = vpop.f32.mrb[0].mxu0
    %117 = vdwg.mxu0
    %118 = vst [vmem:[#allocation7] sm:$0x3] %v113
    // Predicated region
    $region22: #{tpu_custom_call.1} parent=1 // pred_check
      _
    $region23: #{tpu_custom_call.1} parent=1 // pred_check_branch
      %120 = sbr.rel (0) target = $region25
    $region24: #{tpu_custom_call.1} parent=1 // pred_region
      %s122 = ssub.s32 32, 32
      %123 = vsyncadd [#allocation4], %s122
      %s125 = sshll.u32 [#allocation7], 4
      %s126 = int_to_ptr.vmem [resolvable:$true] %s125
      %128 = dma.vmem_to_hbm [thread:$0]  %s126, 32, %s3, [#allocation4]
    $region25: #{tpu_custom_call.1} parent=1 // pred_fallthru
      _
    // Predicated region
    $region26: #{tpu_custom_call.1} parent=1 // pred_check
      _
    $region27: #{tpu_custom_call.1} parent=1 // pred_check_branch
      %130 = sbr.rel (0) target = $region29
    $region28: #{tpu_custom_call.1} parent=1 // pred_region
      %131 = dma.done [#allocation4], 32
    $region29: #{tpu_custom_call.1} parent=1 // pred_fallthru
      _
    %132 = vsyncpa [#allocation3], 1
    %133 = vsyncpa [#allocation6], 1
    %134 = vsyncpa [#allocation4], 1

</llo_original>
